<compile_context>
chip_gen: v7x
topology: tpu7x:2x2x1
jax: 0.10.0
libtpu: 0.0.40
codegen_flags: <defaults>
</compile_context>

<pallas_src>
import math

import jax
import jax.numpy as jnp
from jax.experimental import pallas as pl
from jax.experimental.pallas import tpu as pltpu


# Per-tile byte budget. Default Buffered(2) pipelining keeps 2 input + 2 output
# tiles resident (4x this number), so 8 MiB tiles -> ~32 MiB footprint.
_TILE_BYTES = 8 * 1024 * 1024
_VMEM_LIMIT = 48 * 1024 * 1024          # fits v7x's 64 MiB per-TC VMEM
_LANE_CAP = 32 * 1024                   # max slab lane width (elements)


def _copy_kernel(x_ref, o_ref):
    # Pure lane-dense 2-D copy; memory-bound, no compute-unit concerns.
    o_ref[...] = x_ref[...]


def _sublane_align(dtype):
    """Dtype-aware sublane alignment: 8 for f32, 16 for bf16, 32 for int8/fp8."""
    itemsize = jnp.dtype(dtype).itemsize
    return max(8, 32 // max(itemsize, 1))


def _slab_lane_width(total, cap):
    """Largest multiple of 128 that divides `total` and is <= cap (or None)."""
    c = (min(cap, total) // 128) * 128
    while c >= 128:
        if total % c == 0:
            return c
        c -= 128
    return None


def flatten(x):
    """Pallas equivalent of torch `x.view(x.size(0), -1)`.

    NOTE: if the caller does not need a separately-owned buffer, plain
    `x.reshape(B, -1)` is strictly cheaper (zero HBM traffic).
    """
    B = x.shape[0]
    F = math.prod(x.shape[1:])
    total = B * F
    itemsize = jnp.dtype(x.dtype).itemsize

    if total == 0:
        return x.reshape(B, F)

    sub = _sublane_align(x.dtype)
    lane = _slab_lane_width(total, _LANE_CAP)

    if lane is not None:
        # --- Lane-dense slab path (preferred) -------------------------------
        rows = total // lane
        budget_rows = max(1, _TILE_BYTES // (lane * itemsize))
        if rows <= budget_rows:
            tr = rows                       # full second-minor dim: always legal
        else:
            tr = max(sub, (budget_rows // sub) * sub)
        grid = (pl.cdiv(rows, tr),)

        out = pl.pallas_call(
            _copy_kernel,
            out_shape=jax.ShapeDtypeStruct((rows, lane), x.dtype),
            grid_spec=pl.GridSpec(
                grid=grid,
                in_specs=[pl.BlockSpec((tr, lane), lambda i: (i, 0))],
                out_specs=pl.BlockSpec((tr, lane), lambda i: (i, 0)),
            ),
            compiler_params=pltpu.CompilerParams(
                dimension_semantics=("parallel",),
                vmem_limit_bytes=_VMEM_LIMIT,
            ),
        )(x.reshape(rows, lane))            # free metadata reshape in
        return out.reshape(B, F)            # free metadata reshape out

    # --- Fallback: total not a multiple of 128 ------------------------------
    # Tile the (B, F) view directly. Blocks need not divide the array: the
    # cdiv grid lets Pallas mask the ragged edge blocks, so we clamp to the
    # aligned byte budget instead of ever using a whole dimension as a block.
    x2 = x.reshape(B, F)
    if F <= 128:
        tf = F                              # full last dim: always legal
    else:
        tf = min(_LANE_CAP, (F // 128) * 128)
    budget_rows = max(1, _TILE_BYTES // (tf * itemsize))
    if B <= sub:
        tb = B                              # full second-minor dim: always legal
    else:
        tb = max(sub, min((B // sub) * sub, (budget_rows // sub) * sub))
    grid = (pl.cdiv(B, tb), pl.cdiv(F, tf))

    return pl.pallas_call(
        _copy_kernel,
        out_shape=jax.ShapeDtypeStruct((B, F), x.dtype),
        grid_spec=pl.GridSpec(
            grid=grid,
            in_specs=[pl.BlockSpec((tb, tf), lambda i, j: (i, j))],
            out_specs=pl.BlockSpec((tb, tf), lambda i, j: (i, j)),
        ),
        compiler_params=pltpu.CompilerParams(
            dimension_semantics=("parallel", "parallel"),
            vmem_limit_bytes=_VMEM_LIMIT,
        ),
    )(x2)


if __name__ == "__main__":
    key = jax.random.PRNGKey(0)
    B, C, H, W = 2, 4, 16, 16
    x = jax.random.normal(key, (B, C, H, W), dtype=jnp.float32)

    out = flatten(x)
    jax.block_until_ready(out)

    # Correctness check against plain row-major reshape (torch .view).
    ref = x.reshape(B, -1)
    assert out.shape == (B, C * H * W), out.shape
    assert out.dtype == x.dtype
    assert jnp.array_equal(out, ref), "Flatten kernel mismatch"

    print("KERNEL_OK")
</pallas_src>

<mosaic_0001>
module attributes {stable_mosaic.version = 11 : i64} {
  func.func @_copy_kernel(%arg0: i32, %arg1: memref<1x2048xf32, #tpu.memory_space<vmem>>, %arg2: memref<1x2048xf32, #tpu.memory_space<vmem>>) attributes {dimension_semantics = [#tpu.dimension_semantics<parallel>], iteration_bounds = array<i64: 1>, scalar_prefetch = 0 : i64, scratch_operands = 0 : i64, tpu.core_type = #tpu.core_type<tc>, window_params = [{transform_indices = @transform_0, window_bounds = array<i64: 1, 2048>}, {transform_indices = @transform_1, window_bounds = array<i64: 1, 2048>}]} {
    %c0 = arith.constant 0 : index
    %c0_0 = arith.constant 0 : index
    %0 = vector.load %arg1[%c0, %c0_0] : memref<1x2048xf32, #tpu.memory_space<vmem>>, vector<1x2048xf32>
    %c0_1 = arith.constant 0 : index
    %c0_2 = arith.constant 0 : index
    %1 = vector.load %arg2[%c0_1, %c0_2] : memref<1x2048xf32, #tpu.memory_space<vmem>>, vector<1x2048xf32>
    tpu.vector_store %arg2[%c0_1, %c0_2], %0 {strides = array<i32>} : memref<1x2048xf32, #tpu.memory_space<vmem>>, vector<1x2048xf32>,
    return
  }
  func.func @transform_0(%arg0: i32) -> (i32, i32) {
    %c0_i32 = arith.constant 0 : i32
    %c0_i32_0 = arith.constant 0 : i32
    return %arg0, %c0_i32 : i32, i32
  }
  func.func @transform_1(%arg0: i32) -> (i32, i32) {
    %c0_i32 = arith.constant 0 : i32
    %c0_i32_0 = arith.constant 0 : i32
    return %arg0, %c0_i32 : i32, i32
  }
}

</mosaic_0001>

<llo_original>
// kernel: tpu_custom_call.1
$region0: #{tpu_custom_call.1}
  #allocation0 [shape = 'u32[]', space=smem, size = 0x4, offset = 0x4, fixed_abs, tag = 'smem constant byte address 0x4 - core index']
  #allocation1 [shape = 'u32[144,128]{1,0:T(1,128)}', space=vmem, size = 0x12000, scoped, tag = 'internal scratch']
  %s0 = inlined_call_operand.hbm [shape: f32[1,2048], index: 0, kind: input, shape index: {}]
  %s1 = inlined_call_operand.hbm [shape: f32[1,2048], index: 1, kind: output, shape index: {}]
  %s2 = sld [smem:[#allocation0]]
  $region18: #{tpu_custom_call.1} parent=0
    _
  %s4 = ssub.s32 1, %s2
  %s5 = scalar_select 0, %s4, %s2
  $region1: #{tpu_custom_call.1} parent=0
    #allocation2 [shape = 'u8[8192]{0}', space=vmem, size = 0x2000, scoped, tag = 'input window, operand 0, single buffered']
    #allocation3 [shape = 's32[1]{0}', space=sflag, size = 0x4, scoped, tag = 'scoped memory for tpu_custom_call.1']
    #allocation4 [shape = 's32[1]{0}', space=sflag, size = 0x4, scoped, tag = 'scoped memory for tpu_custom_call.1']
    #allocation5 [shape = 'u8[8192]{0}', space=vmem, size = 0x2000, scoped, tag = 'output window, operand 0, single buffered']
    %6 = vsyncpa [#allocation3], 0
    %7 = vsyncpa [#allocation4], 0
    // Predicated region
    $region2: #{tpu_custom_call.1} parent=1 // pred_check
      _
    $region3: #{tpu_custom_call.1} parent=1 // pred_check_branch
      %9 = sbr.rel (0) target = $region5
    $region4: #{tpu_custom_call.1} parent=1 // pred_region
      %s11 = ssub.s32 256, 256
      %12 = vsyncadd [#allocation3], %s11
      %s14 = sshll.u32 [#allocation2], 4
      %s15 = int_to_ptr.vmem [resolvable:$true] %s14
      %17 = dma.hbm_to_vmem [thread:$0]  %s0, 256, %s15, [#allocation3]
    $region5: #{tpu_custom_call.1} parent=1 // pred_fallthru
      _
    // Predicated region
    $region6: #{tpu_custom_call.1} parent=1 // pred_check
      _
    $region7: #{tpu_custom_call.1} parent=1 // pred_check_branch
      %19 = sbr.rel (0) target = $region9
    $region8: #{tpu_custom_call.1} parent=1 // pred_region
      %20 = dma.done [#allocation3], 256
    $region9: #{tpu_custom_call.1} parent=1 // pred_fallthru
      _
    %v21 = vld [vmem:[#allocation2] sm:$0xff]
    %v22 = vld [vmem:[#allocation2 + $0x8] sm:$0xff]
    %23 = vst [vmem:[#allocation5] sm:$0xff] %v21
    %24 = vst [vmem:[#allocation5 + $0x8] sm:$0xff] %v22
    // Predicated region
    $region10: #{tpu_custom_call.1} parent=1 // pred_check
      _
    $region11: #{tpu_custom_call.1} parent=1 // pred_check_branch
      %26 = sbr.rel (0) target = $region13
    $region12: #{tpu_custom_call.1} parent=1 // pred_region
      %s28 = ssub.s32 256, 256
      %29 = vsyncadd [#allocation4], %s28
      %s31 = sshll.u32 [#allocation5], 4
      %s32 = int_to_ptr.vmem [resolvable:$true] %s31
      %34 = dma.vmem_to_hbm [thread:$0]  %s32, 256, %s1, [#allocation4]
    $region13: #{tpu_custom_call.1} parent=1 // pred_fallthru
      _
    // Predicated region
    $region14: #{tpu_custom_call.1} parent=1 // pred_check
      _
    $region15: #{tpu_custom_call.1} parent=1 // pred_check_branch
      %36 = sbr.rel (0) target = $region17
    $region16: #{tpu_custom_call.1} parent=1 // pred_region
      %37 = dma.done [#allocation4], 256
    $region17: #{tpu_custom_call.1} parent=1 // pred_fallthru
      _
    %38 = vsyncpa [#allocation3], 1
    %39 = vsyncpa [#allocation4], 1

</llo_original>
